<compile_context>
chip_gen: v5e
topology: v5e:2x2
jax: 0.10.0
libtpu: 0.0.40
codegen_flags: <defaults>
</compile_context>

<pallas_src>
import jax
import jax.numpy as jnp
from jax.experimental import pallas as pl
from jax.experimental.pallas import tpu as pltpu


def mlp_encoder_kernel(x_ref, w1_ref, b1_ref, w2_ref, b2_ref, o_ref):
    """Fused two-layer MLP encoder for one batch tile.

    x_ref:  (TB, D_in)   input tile
    w1_ref: (H, D_in)    first Linear weight, PyTorch (out, in) layout
    b1_ref: (1, H)       first Linear bias
    w2_ref: (H, H)       second Linear weight, PyTorch (out, in) layout
    b2_ref: (1, H)       second Linear bias
    o_ref:  (TB, H)      output tile
    """
    x = x_ref[...]

    # h = relu(x @ W1^T + b1)  -- MXU matmul with transposed RHS, f32 accumulate
    h = jnp.dot(x, w1_ref[...].T, preferred_element_type=jnp.float32) + b1_ref[...]
    h = jnp.maximum(h, 0.0)

    # TODO(synk): nn.Dropout(0.2) is identity in eval mode; a training-mode
    # stochastic mask would use pltpu.prng_seed + pltpu.prng_random_bits.

    # y = relu(h @ W2^T + b2)
    y = jnp.dot(h, w2_ref[...].T, preferred_element_type=jnp.float32) + b2_ref[...]
    o_ref[...] = jnp.maximum(y, 0.0).astype(o_ref.dtype)


def multimodal_encoder_forward(x, w1, b1, w2, b2, *, block_b=8):
    """Matches MultiModalEncoder.forward (eval mode): two Linear+ReLU layers."""
    B, D = x.shape
    H = w1.shape[0]

    # Pad batch up to a sublane multiple so every tile is a full (8,128) vreg tile.
    Bp = ((B + block_b - 1) // block_b) * block_b
    x_p = x.astype(jnp.float32)
    if Bp != B:
        x_p = jnp.pad(x_p, ((0, Bp - B), (0, 0)))

    out = pl.pallas_call(
        mlp_encoder_kernel,
        out_shape=jax.ShapeDtypeStruct((Bp, H), jnp.float32),
        grid=(Bp // block_b,),
        in_specs=[
            pl.BlockSpec((block_b, D), lambda i: (i, 0)),  # x tile
            pl.BlockSpec((H, D), lambda i: (0, 0)),        # W1 (resident)
            pl.BlockSpec((1, H), lambda i: (0, 0)),        # b1 (resident)
            pl.BlockSpec((H, H), lambda i: (0, 0)),        # W2 (resident)
            pl.BlockSpec((1, H), lambda i: (0, 0)),        # b2 (resident)
        ],
        out_specs=pl.BlockSpec((block_b, H), lambda i: (i, 0)),
        compiler_params=pltpu.CompilerParams(
            dimension_semantics=("parallel",)),            # batch tiles are independent
    )(
        x_p,
        w1.astype(jnp.float32),
        b1[None, :].astype(jnp.float32),
        w2.astype(jnp.float32),
        b2[None, :].astype(jnp.float32),
    )
    return out[:B]


def reference_forward(x, w1, b1, w2, b2):
    """Pure-JAX reference with PyTorch Linear semantics (y = x @ W^T + b)."""
    hp = jax.lax.Precision.HIGHEST
    h = jnp.maximum(jnp.dot(x, w1.T, precision=hp) + b1, 0.0)
    y = jnp.maximum(jnp.dot(h, w2.T, precision=hp) + b2, 0.0)
    return y


if __name__ == "__main__":
    # Small shapes consistent with the module: x is (batch, input_dim),
    # hidden_dim defaults to 256 (lane-aligned).
    B = 2
    input_dim = 128
    hidden_dim = 256

    key = jax.random.PRNGKey(0)
    k_x, k_w1, k_b1, k_w2, k_b2 = jax.random.split(key, 5)

    # PyTorch-style uniform(-1/sqrt(fan_in), 1/sqrt(fan_in)) Linear init.
    bound1 = 1.0 / jnp.sqrt(jnp.float32(input_dim))
    bound2 = 1.0 / jnp.sqrt(jnp.float32(hidden_dim))
    x = jax.random.normal(k_x, (B, input_dim), jnp.float32)
    w1 = jax.random.uniform(k_w1, (hidden_dim, input_dim), jnp.float32, -bound1, bound1)
    b1 = jax.random.uniform(k_b1, (hidden_dim,), jnp.float32, -bound1, bound1)
    w2 = jax.random.uniform(k_w2, (hidden_dim, hidden_dim), jnp.float32, -bound2, bound2)
    b2 = jax.random.uniform(k_b2, (hidden_dim,), jnp.float32, -bound2, bound2)

    out = multimodal_encoder_forward(x, w1, b1, w2, b2)
    out = jax.block_until_ready(out)

    ref = jax.block_until_ready(reference_forward(x, w1, b1, w2, b2))

    assert out.shape == (B, hidden_dim), out.shape
    max_err = jnp.max(jnp.abs(out - ref))
    assert jnp.allclose(out, ref, atol=1e-3, rtol=1e-3), f"max abs err = {max_err}"

    print("KERNEL_OK")
</pallas_src>

<mosaic_0001>
module attributes {stable_mosaic.version = 11 : i64} {
  func.func @mlp_encoder_kernel(%arg0: i32, %arg1: memref<8x128xf32, #tpu.memory_space<vmem>>, %arg2: memref<256x128xf32, #tpu.memory_space<vmem>>, %arg3: memref<1x256xf32, #tpu.memory_space<vmem>>, %arg4: memref<256x256xf32, #tpu.memory_space<vmem>>, %arg5: memref<1x256xf32, #tpu.memory_space<vmem>>, %arg6: memref<8x256xf32, #tpu.memory_space<vmem>>) attributes {dimension_semantics = [#tpu.dimension_semantics<parallel>], iteration_bounds = array<i64: 1>, scalar_prefetch = 0 : i64, scratch_operands = 0 : i64, tpu.core_type = #tpu.core_type<tc>, window_params = [{transform_indices = @transform_0, window_bounds = array<i64: 8, 128>}, {pipeline_mode = #tpu.pipeline_mode<synchronous>, transform_indices = @transform_1, window_bounds = array<i64: 256, 128>}, {pipeline_mode = #tpu.pipeline_mode<synchronous>, transform_indices = @transform_2, window_bounds = array<i64: 1, 256>}, {pipeline_mode = #tpu.pipeline_mode<synchronous>, transform_indices = @transform_3, window_bounds = array<i64: 256, 256>}, {pipeline_mode = #tpu.pipeline_mode<synchronous>, transform_indices = @transform_4, window_bounds = array<i64: 1, 256>}, {transform_indices = @transform_5, window_bounds = array<i64: 8, 256>}]} {
    %c0 = arith.constant 0 : index
    %c0_0 = arith.constant 0 : index
    %0 = vector.load %arg1[%c0, %c0_0] : memref<8x128xf32, #tpu.memory_space<vmem>>, vector<8x128xf32>
    %c0_1 = arith.constant 0 : index
    %c0_2 = arith.constant 0 : index
    %1 = vector.load %arg2[%c0_1, %c0_2] : memref<256x128xf32, #tpu.memory_space<vmem>>, vector<256x128xf32>
    %2 = tpu.transpose %1, [1, 0] : vector<256x128xf32> -> vector<128x256xf32>
    %cst = arith.constant dense<0.000000e+00> : vector<8x256xf32>
    %3 = tpu.matmul %0, %2, %cst {dimension_numbers = #tpu.dot_dimension_numbers<[1], [0], [0], [1], [0, 0, 1, 1], [], []>} : vector<8x128xf32>, vector<128x256xf32>, vector<8x256xf32> -> vector<8x256xf32>
    %c0_3 = arith.constant 0 : index
    %c0_4 = arith.constant 0 : index
    %4 = vector.load %arg3[%c0_3, %c0_4] : memref<1x256xf32, #tpu.memory_space<vmem>>, vector<1x256xf32>
    %5 = vector.broadcast %4 : vector<1x256xf32> to vector<8x256xf32>
    %6 = arith.addf %3, %5 : vector<8x256xf32>
    %cst_5 = arith.constant 0.000000e+00 : f32
    %7 = vector.broadcast %cst_5 : f32 to vector<8x256xf32>
    %8 = arith.maximumf %6, %7 : vector<8x256xf32>
    %c0_6 = arith.constant 0 : index
    %c0_7 = arith.constant 0 : index
    %9 = vector.load %arg4[%c0_6, %c0_7] : memref<256x256xf32, #tpu.memory_space<vmem>>, vector<256x256xf32>
    %10 = tpu.transpose %9, [1, 0] : vector<256x256xf32> -> vector<256x256xf32>
    %cst_8 = arith.constant dense<0.000000e+00> : vector<8x256xf32>
    %11 = tpu.matmul %8, %10, %cst_8 {dimension_numbers = #tpu.dot_dimension_numbers<[1], [0], [0], [1], [0, 0, 1, 1], [], []>} : vector<8x256xf32>, vector<256x256xf32>, vector<8x256xf32> -> vector<8x256xf32>
    %c0_9 = arith.constant 0 : index
    %c0_10 = arith.constant 0 : index
    %12 = vector.load %arg5[%c0_9, %c0_10] : memref<1x256xf32, #tpu.memory_space<vmem>>, vector<1x256xf32>
    %13 = vector.broadcast %12 : vector<1x256xf32> to vector<8x256xf32>
    %14 = arith.addf %11, %13 : vector<8x256xf32>
    %cst_11 = arith.constant 0.000000e+00 : f32
    %15 = vector.broadcast %cst_11 : f32 to vector<8x256xf32>
    %16 = arith.maximumf %14, %15 : vector<8x256xf32>
    %c0_12 = arith.constant 0 : index
    %c0_13 = arith.constant 0 : index
    %17 = vector.load %arg6[%c0_12, %c0_13] : memref<8x256xf32, #tpu.memory_space<vmem>>, vector<8x256xf32>
    tpu.vector_store %arg6[%c0_12, %c0_13], %16 {strides = array<i32>} : memref<8x256xf32, #tpu.memory_space<vmem>>, vector<8x256xf32>,
    return
  }
  func.func @transform_0(%arg0: i32) -> (i32, i32) {
    %c0_i32 = arith.constant 0 : i32
    %c0_i32_0 = arith.constant 0 : i32
    return %arg0, %c0_i32 : i32, i32
  }
  func.func @transform_1(%arg0: i32) -> (i32, i32) {
    %c0_i32 = arith.constant 0 : i32
    %c0_i32_0 = arith.constant 0 : i32
    %c0_i32_1 = arith.constant 0 : i32
    return %c0_i32, %c0_i32_0 : i32, i32
  }
  func.func @transform_2(%arg0: i32) -> (i32, i32) {
    %c0_i32 = arith.constant 0 : i32
    %c0_i32_0 = arith.constant 0 : i32
    %c0_i32_1 = arith.constant 0 : i32
    return %c0_i32, %c0_i32_0 : i32, i32
  }
  func.func @transform_3(%arg0: i32) -> (i32, i32) {
    %c0_i32 = arith.constant 0 : i32
    %c0_i32_0 = arith.constant 0 : i32
    %c0_i32_1 = arith.constant 0 : i32
    return %c0_i32, %c0_i32_0 : i32, i32
  }
  func.func @transform_4(%arg0: i32) -> (i32, i32) {
    %c0_i32 = arith.constant 0 : i32
    %c0_i32_0 = arith.constant 0 : i32
    %c0_i32_1 = arith.constant 0 : i32
    return %c0_i32, %c0_i32_0 : i32, i32
  }
  func.func @transform_5(%arg0: i32) -> (i32, i32) {
    %c0_i32 = arith.constant 0 : i32
    %c0_i32_0 = arith.constant 0 : i32
    return %arg0, %c0_i32 : i32, i32
  }
}

</mosaic_0001>

<llo_original>
// kernel: tpu_custom_call.1
$region0: #{tpu_custom_call.1}
  #allocation0 [shape = 'u32[]', space=smem, size = 0x4, offset = 0x4, fixed_abs, tag = 'smem constant byte address 0x4 - core index']
  #allocation1 [shape = 'u32[72,128]{1,0:T(1,128)}', space=vmem, size = 0x9000, scoped, tag = 'internal scratch']
  %s0 = inlined_call_operand.hbm [shape: f32[8,128], index: 0, kind: input, shape index: {}]
  %s1 = inlined_call_operand.hbm [shape: f32[256,128], index: 1, kind: input, shape index: {}]
  %s2 = inlined_call_operand.hbm [shape: f32[1,256], index: 2, kind: input, shape index: {}]
  %s3 = inlined_call_operand.hbm [shape: f32[256,256], index: 3, kind: input, shape index: {}]
  %s4 = inlined_call_operand.vmem [shape: f32[1,256], index: 4, kind: input, shape index: {}]
  %s5 = inlined_call_operand.hbm [shape: f32[8,256], index: 5, kind: output, shape index: {}]
  %s6 = sld [smem:[#allocation0]]
  $region46: #{tpu_custom_call.1} parent=0
    _
  %s8 = ssub.s32 1, %s6
  %s9 = scalar_select 0, %s8, %s6
  $region1: #{tpu_custom_call.1} parent=0
    #allocation2 [shape = 'u8[4096]{0}', space=vmem, size = 0x1000, scoped, tag = 'input window, operand 0, single buffered']
    #allocation3 [shape = 's32[1]{0}', space=sflag, size = 0x4, scoped, tag = 'scoped memory for tpu_custom_call.1']
    #allocation4 [shape = 's32[1]{0}', space=sflag, size = 0x4, scoped, tag = 'scoped memory for tpu_custom_call.1']
    #allocation5 [shape = 'u8[131072]{0}', space=vmem, size = 0x20000, scoped, tag = 'input window, operand 1, single buffered']
    #allocation6 [shape = 's32[1]{0}', space=sflag, size = 0x4, scoped, tag = 'scoped memory for tpu_custom_call.1']
    #allocation7 [shape = 'u8[1024]{0}', space=vmem, size = 0x400, scoped, tag = 'input window, operand 2, single buffered']
    #allocation8 [shape = 'u8[262144]{0}', space=vmem, size = 0x40000, scoped, tag = 'input window, operand 3, single buffered']
    #allocation9 [shape = 's32[1]{0}', space=sflag, size = 0x4, scoped, tag = 'scoped memory for tpu_custom_call.1']
    #allocation10 [shape = 'u8[8192]{0}', space=vmem, size = 0x2000, scoped, tag = 'output window, operand 0, single buffered']
    %10 = vsyncpa [#allocation3], 0
    %11 = vsyncpa [#allocation6], 0
    %12 = vsyncpa [#allocation9], 0
    %13 = vsyncpa [#allocation4], 0
    // Predicated region
    $region2: #{tpu_custom_call.1} parent=1 // pred_check
      _
    $region3: #{tpu_custom_call.1} parent=1 // pred_check_branch
      %15 = sbr.rel (0) target = $region5
    $region4: #{tpu_custom_call.1} parent=1 // pred_region
      %17 = vsyncadd [#allocation3], 0
      %s19 = sshll.u32 %s0, 4
      %s20 = int_to_ptr.hbm [resolvable:$true] %s19
      %s21 = sshll.u32 [#allocation2], 4
      %s22 = int_to_ptr.vmem [resolvable:$true] %s21
      %24 = dma.hbm_to_vmem [thread:$0]  %s20, 128, %s22, [#allocation3]
    $region5: #{tpu_custom_call.1} parent=1 // pred_fallthru
      _
    // Predicated region
    $region6: #{tpu_custom_call.1} parent=1 // pred_check
      _
    $region7: #{tpu_custom_call.1} parent=1 // pred_check_branch
      %26 = sbr.rel (0) target = $region9
    $region8: #{tpu_custom_call.1} parent=1 // pred_region
      %28 = vsyncadd [#allocation6], 0
      %s29 = sshll.u32 %s1, 4
      %s30 = int_to_ptr.hbm [resolvable:$true] %s29
      %s31 = sshll.u32 [#allocation5], 4
      %s32 = int_to_ptr.vmem [resolvable:$true] %s31
      %37 = dma.hbm_to_vmem [thread:$0]  %s30, 4096, %s32, [#allocation6], 128, 128, 8
    $region9: #{tpu_custom_call.1} parent=1 // pred_fallthru
      _
    // Predicated region
    $region10: #{tpu_custom_call.1} parent=1 // pred_check
      _
    $region11: #{tpu_custom_call.1} parent=1 // pred_check_branch
      %39 = sbr.rel (0) target = $region13
    $region12: #{tpu_custom_call.1} parent=1 // pred_region
      %41 = vsyncadd [#allocation6], 0
      %s43 = sshll.u32 %s2, 4
      %s44 = int_to_ptr.hbm [resolvable:$true] %s43
      %s45 = sshll.u32 [#allocation7], 4
      %s46 = int_to_ptr.vmem [resolvable:$true] %s45
      %48 = dma.hbm_to_vmem [thread:$0]  %s44, 32, %s46, [#allocation6]
    $region13: #{tpu_custom_call.1} parent=1 // pred_fallthru
      _
    // Predicated region
    $region14: #{tpu_custom_call.1} parent=1 // pred_check
      _
    $region15: #{tpu_custom_call.1} parent=1 // pred_check_branch
      %50 = sbr.rel (0) target = $region17
    $region16: #{tpu_custom_call.1} parent=1 // pred_region
      %52 = vsyncadd [#allocation9], 0
      %s53 = sshll.u32 %s3, 4
      %s54 = int_to_ptr.hbm [resolvable:$true] %s53
      %s55 = sshll.u32 [#allocation8], 4
      %s56 = int_to_ptr.vmem [resolvable:$true] %s55
      %61 = dma.hbm_to_vmem [thread:$0]  %s54, 8192, %s56, [#allocation9], 256, 256, 16
    $region17: #{tpu_custom_call.1} parent=1 // pred_fallthru
      _
    // Predicated region
    $region18: #{tpu_custom_call.1} parent=1 // pred_check
      _
    $region19: #{tpu_custom_call.1} parent=1 // pred_check_branch
      %63 = sbr.rel (0) target = $region21
    $region20: #{tpu_custom_call.1} parent=1 // pred_region
      _
    $region21: #{tpu_custom_call.1} parent=1 // pred_fallthru
      _
    // Predicated region
    $region22: #{tpu_custom_call.1} parent=1 // pred_check
      _
    $region23: #{tpu_custom_call.1} parent=1 // pred_check_branch
      %65 = sbr.rel (0) target = $region25
    $region24: #{tpu_custom_call.1} parent=1 // pred_region
      %67 = dma.done [#allocation3], 128
    $region25: #{tpu_custom_call.1} parent=1 // pred_fallthru
      _
    // Predicated region
    $region26: #{tpu_custom_call.1} parent=1 // pred_check
      _
    $region27: #{tpu_custom_call.1} parent=1 // pred_check_branch
      %69 = sbr.rel (0) target = $region29
    $region28: #{tpu_custom_call.1} parent=1 // pred_region
      %71 = dma.done [#allocation6], 4096
    $region29: #{tpu_custom_call.1} parent=1 // pred_fallthru
      _
    // Predicated region
    $region30: #{tpu_custom_call.1} parent=1 // pred_check
      _
    $region31: #{tpu_custom_call.1} parent=1 // pred_check_branch
      %73 = sbr.rel (0) target = $region33
    $region32: #{tpu_custom_call.1} parent=1 // pred_region
      %75 = dma.done [#allocation6], 32
    $region33: #{tpu_custom_call.1} parent=1 // pred_fallthru
      _
    // Predicated region
    $region34: #{tpu_custom_call.1} parent=1 // pred_check
      _
    $region35: #{tpu_custom_call.1} parent=1 // pred_check_branch
      %77 = sbr.rel (0) target = $region37
    $region36: #{tpu_custom_call.1} parent=1 // pred_region
      %79 = dma.done [#allocation9], 8192
    $region37: #{tpu_custom_call.1} parent=1 // pred_fallthru
      _
    %v80 = vld [vmem:[#allocation2] sm:$0xff]
    %v81 = vld [vmem:[#allocation5] sm:$0xff]
    %v82 = vld [vmem:[#allocation5 + $0x8] sm:$0xff]
    %v83 = vld [vmem:[#allocation5 + $0x10] sm:$0xff]
    %v84 = vld [vmem:[#allocation5 + $0x18] sm:$0xff]
    %v85 = vld [vmem:[#allocation5 + $0x20] sm:$0xff]
    %v86 = vld [vmem:[#allocation5 + $0x28] sm:$0xff]
    %v87 = vld [vmem:[#allocation5 + $0x30] sm:$0xff]
    %v88 = vld [vmem:[#allocation5 + $0x38] sm:$0xff]
    %v89 = vld [vmem:[#allocation5 + $0x40] sm:$0xff]
    %v90 = vld [vmem:[#allocation5 + $0x48] sm:$0xff]
    %v91 = vld [vmem:[#allocation5 + $0x50] sm:$0xff]
    %v92 = vld [vmem:[#allocation5 + $0x58] sm:$0xff]
    %v93 = vld [vmem:[#allocation5 + $0x60] sm:$0xff]
    %v94 = vld [vmem:[#allocation5 + $0x68] sm:$0xff]
    %v95 = vld [vmem:[#allocation5 + $0x70] sm:$0xff]
    %v96 = vld [vmem:[#allocation5 + $0x78] sm:$0xff]
    %v97 = vld [vmem:[#allocation5 + $0x80] sm:$0xff]
    %v98 = vld [vmem:[#allocation5 + $0x88] sm:$0xff]
    %v99 = vld [vmem:[#allocation5 + $0x90] sm:$0xff]
    %v100 = vld [vmem:[#allocation5 + $0x98] sm:$0xff]
    %v101 = vld [vmem:[#allocation5 + $0xa0] sm:$0xff]
    %v102 = vld [vmem:[#allocation5 + $0xa8] sm:$0xff]
    %v103 = vld [vmem:[#allocation5 + $0xb0] sm:$0xff]
    %v104 = vld [vmem:[#allocation5 + $0xb8] sm:$0xff]
    %v105 = vld [vmem:[#allocation5 + $0xc0] sm:$0xff]
    %v106 = vld [vmem:[#allocation5 + $0xc8] sm:$0xff]
    %v107 = vld [vmem:[#allocation5 + $0xd0] sm:$0xff]
    %v108 = vld [vmem:[#allocation5 + $0xd8] sm:$0xff]
    %v109 = vld [vmem:[#allocation5 + $0xe0] sm:$0xff]
    %v110 = vld [vmem:[#allocation5 + $0xe8] sm:$0xff]
    %v111 = vld [vmem:[#allocation5 + $0xf0] sm:$0xff]
    %v112 = vld [vmem:[#allocation5 + $0xf8] sm:$0xff]
    %v113 = vld [vmem:[#allocation7] sm:$0x3]
    %v115 = vperm.slane %v113, 0
    %v116 = vperm.slane %v113, 1
    %119 = vmatpush.xpose.msra.mxu0 %v96
    %120 = vmatpush.xpose.msra.mxu0 %v95
    %121 = vmatpush.xpose.msra.mxu0 %v94
    %122 = vmatpush.xpose.msra.mxu0 %v93
    %123 = vmatpush.xpose.msra.mxu0 %v92
    %124 = vmatpush.xpose.msra.mxu0 %v91
    %125 = vmatpush.xpose.msra.mxu0 %v90
    %126 = vmatpush.xpose.msra.mxu0 %v89
    %127 = vmatpush.xpose.msra.mxu0 %v88
    %128 = vmatpush.xpose.msra.mxu0 %v87
    %129 = vmatpush.xpose.msra.mxu0 %v86
    %130 = vmatpush.xpose.msra.mxu0 %v85
    %131 = vmatpush.xpose.msra.mxu0 %v84
    %132 = vmatpush.xpose.msra.mxu0 %v83
    %133 = vmatpush.xpose.msra.mxu0 %v82
    %134 = vmatpush.xpose.msra.mxu0 %v81
    %135 = vmatmul.f32.gmra.mxu0 %v80
    %v136 = vpop.f32.mrf.mxu0
    %v137 = vadd.f32 %v115, %v136
    %138 = vdwg.mxu0
    %139 = vmatpush.xpose.msra.mxu0 %v112
    %140 = vmatpush.xpose.msra.mxu0 %v111
    %141 = vmatpush.xpose.msra.mxu0 %v110
    %142 = vmatpush.xpose.msra.mxu0 %v109
    %143 = vmatpush.xpose.msra.mxu0 %v108
    %144 = vmatpush.xpose.msra.mxu0 %v107
    %145 = vmatpush.xpose.msra.mxu0 %v106
    %146 = vmatpush.xpose.msra.mxu0 %v105
    %147 = vmatpush.xpose.msra.mxu0 %v104
    %148 = vmatpush.xpose.msra.mxu0 %v103
    %149 = vmatpush.xpose.msra.mxu0 %v102
    %150 = vmatpush.xpose.msra.mxu0 %v101
    %151 = vmatpush.xpose.msra.mxu0 %v100
    %152 = vmatpush.xpose.msra.mxu0 %v99
    %153 = vmatpush.xpose.msra.mxu0 %v98
    %154 = vmatpush.xpose.msra.mxu0 %v97
    %155 = vmatmul.f32.gmra.mxu0 %v80
    %v156 = vpop.f32.mrf.mxu0
    %v157 = vadd.f32 %v116, %v156
    %158 = vdwg.mxu0
    %v159 = vmax.f32 %v137, 0.0
    %v160 = vmax.f32 %v157, 0.0
    %v161 = vld [vmem:[#allocation8] sm:$0xff]
    %v162 = vld [vmem:[#allocation8 + $0x8] sm:$0xff]
    %v163 = vld [vmem:[#allocation8 + $0x10] sm:$0xff]
    %v164 = vld [vmem:[#allocation8 + $0x18] sm:$0xff]
    %v165 = vld [vmem:[#allocation8 + $0x20] sm:$0xff]
    %v166 = vld [vmem:[#allocation8 + $0x28] sm:$0xff]
    %v167 = vld [vmem:[#allocation8 + $0x30] sm:$0xff]
    %v168 = vld [vmem:[#allocation8 + $0x38] sm:$0xff]
    %v169 = vld [vmem:[#allocation8 + $0x40] sm:$0xff]
    %v170 = vld [vmem:[#allocation8 + $0x48] sm:$0xff]
    %v171 = vld [vmem:[#allocation8 + $0x50] sm:$0xff]
    %v172 = vld [vmem:[#allocation8 + $0x58] sm:$0xff]
    %v173 = vld [vmem:[#allocation8 + $0x60] sm:$0xff]
    %v174 = vld [vmem:[#allocation8 + $0x68] sm:$0xff]
    %v175 = vld [vmem:[#allocation8 + $0x70] sm:$0xff]
    %v176 = vld [vmem:[#allocation8 + $0x78] sm:$0xff]
    %v177 = vld [vmem:[#allocation8 + $0x80] sm:$0xff]
    %v178 = vld [vmem:[#allocation8 + $0x88] sm:$0xff]
    %v179 = vld [vmem:[#allocation8 + $0x90] sm:$0xff]
    %v180 = vld [vmem:[#allocation8 + $0x98] sm:$0xff]
    %v181 = vld [vmem:[#allocation8 + $0xa0] sm:$0xff]
    %v182 = vld [vmem:[#allocation8 + $0xa8] sm:$0xff]
    %v183 = vld [vmem:[#allocation8 + $0xb0] sm:$0xff]
    %v184 = vld [vmem:[#allocation8 + $0xb8] sm:$0xff]
    %v185 = vld [vmem:[#allocation8 + $0xc0] sm:$0xff]
    %v186 = vld [vmem:[#allocation8 + $0xc8] sm:$0xff]
    %v187 = vld [vmem:[#allocation8 + $0xd0] sm:$0xff]
    %v188 = vld [vmem:[#allocation8 + $0xd8] sm:$0xff]
    %v189 = vld [vmem:[#allocation8 + $0xe0] sm:$0xff]
    %v190 = vld [vmem:[#allocation8 + $0xe8] sm:$0xff]
    %v191 = vld [vmem:[#allocation8 + $0xf0] sm:$0xff]
    %v192 = vld [vmem:[#allocation8 + $0xf8] sm:$0xff]
    %v193 = vld [vmem:[#allocation8 + $0x100] sm:$0xff]
    %v194 = vld [vmem:[#allocation8 + $0x108] sm:$0xff]
    %v195 = vld [vmem:[#allocation8 + $0x110] sm:$0xff]
    %v196 = vld [vmem:[#allocation8 + $0x118] sm:$0xff]
    %v197 = vld [vmem:[#allocation8 + $0x120] sm:$0xff]
    %v198 = vld [vmem:[#allocation8 + $0x128] sm:$0xff]
    %v199 = vld [vmem:[#allocation8 + $0x130] sm:$0xff]
    %v200 = vld [vmem:[#allocation8 + $0x138] sm:$0xff]
    %v201 = vld [vmem:[#allocation8 + $0x140] sm:$0xff]
    %v202 = vld [vmem:[#allocation8 + $0x148] sm:$0xff]
    %v203 = vld [vmem:[#allocation8 + $0x150] sm:$0xff]
    %v204 = vld [vmem:[#allocation8 + $0x158] sm:$0xff]
    %v205 = vld [vmem:[#allocation8 + $0x160] sm:$0xff]
    %v206 = vld [vmem:[#allocation8 + $0x168] sm:$0xff]
    %v207 = vld [vmem:[#allocation8 + $0x170] sm:$0xff]
    %v208 = vld [vmem:[#allocation8 + $0x178] sm:$0xff]
    %v209 = vld [vmem:[#allocation8 + $0x180] sm:$0xff]
    %v210 = vld [vmem:[#allocation8 + $0x188] sm:$0xff]
    %v211 = vld [vmem:[#allocation8 + $0x190] sm:$0xff]
    %v212 = vld [vmem:[#allocation8 + $0x198] sm:$0xff]
    %v213 = vld [vmem:[#allocation8 + $0x1a0] sm:$0xff]
    %v214 = vld [vmem:[#allocation8 + $0x1a8] sm:$0xff]
    %v215 = vld [vmem:[#allocation8 + $0x1b0] sm:$0xff]
    %v216 = vld [vmem:[#allocation8 + $0x1b8] sm:$0xff]
    %v217 = vld [vmem:[#allocation8 + $0x1c0] sm:$0xff]
    %v218 = vld [vmem:[#allocation8 + $0x1c8] sm:$0xff]
    %v219 = vld [vmem:[#allocation8 + $0x1d0] sm:$0xff]
    %v220 = vld [vmem:[#allocation8 + $0x1d8] sm:$0xff]
    %v221 = vld [vmem:[#allocation8 + $0x1e0] sm:$0xff]
    %v222 = vld [vmem:[#allocation8 + $0x1e8] sm:$0xff]
    %v223 = vld [vmem:[#allocation8 + $0x1f0] sm:$0xff]
    %v224 = vld [vmem:[#allocation8 + $0x1f8] sm:$0xff]
    %v225 = vld [vmem:[%s4] sm:$0x3]
    %v227 = vperm.slane %v225, 0
    %v228 = vperm.slane %v225, 1
    %231 = vmatpush.xpose.msra.mxu0 %v191
    %232 = vmatpush.xpose.msra.mxu0 %v189
    %233 = vmatpush.xpose.msra.mxu0 %v187
    %234 = vmatpush.xpose.msra.mxu0 %v185
    %235 = vmatpush.xpose.msra.mxu0 %v183
    %236 = vmatpush.xpose.msra.mxu0 %v181
    %237 = vmatpush.xpose.msra.mxu0 %v179
    %238 = vmatpush.xpose.msra.mxu0 %v177
    %239 = vmatpush.xpose.msra.mxu0 %v175
    %240 = vmatpush.xpose.msra.mxu0 %v173
    %241 = vmatpush.xpose.msra.mxu0 %v171
    %242 = vmatpush.xpose.msra.mxu0 %v169
    %243 = vmatpush.xpose.msra.mxu0 %v167
    %244 = vmatpush.xpose.msra.mxu0 %v165
    %245 = vmatpush.xpose.msra.mxu0 %v163
    %246 = vmatpush.xpose.msra.mxu0 %v161
    %247 = vmatmul.f32.gmra.mxu0 %v159
    %v248 = vpop.f32.mrf.mxu0
    %v249 = vadd.f32 %v227, %v248
    %250 = vdwg.mxu0
    %251 = vmatpush.xpose.msra.mxu0 %v192
    %252 = vmatpush.xpose.msra.mxu0 %v190
    %253 = vmatpush.xpose.msra.mxu0 %v188
    %254 = vmatpush.xpose.msra.mxu0 %v186
    %255 = vmatpush.xpose.msra.mxu0 %v184
    %256 = vmatpush.xpose.msra.mxu0 %v182
    %257 = vmatpush.xpose.msra.mxu0 %v180
    %258 = vmatpush.xpose.msra.mxu0 %v178
    %259 = vmatpush.xpose.msra.mxu0 %v176
    %260 = vmatpush.xpose.msra.mxu0 %v174
    %261 = vmatpush.xpose.msra.mxu0 %v172
    %262 = vmatpush.xpose.msra.mxu0 %v170
    %263 = vmatpush.xpose.msra.mxu0 %v168
    %264 = vmatpush.xpose.msra.mxu0 %v166
    %265 = vmatpush.xpose.msra.mxu0 %v164
    %266 = vmatpush.xpose.msra.mxu0 %v162
    %267 = vmatmul.f32.gmra.mxu0 %v160
    %v268 = vpop.f32.mrf.mxu0
    %v269 = vadd.f32 %v249, %v268
    %270 = vdwg.mxu0
    %271 = vmatpush.xpose.msra.mxu0 %v223
    %272 = vmatpush.xpose.msra.mxu0 %v221
    %273 = vmatpush.xpose.msra.mxu0 %v219
    %274 = vmatpush.xpose.msra.mxu0 %v217
    %275 = vmatpush.xpose.msra.mxu0 %v215
    %276 = vmatpush.xpose.msra.mxu0 %v213
    %277 = vmatpush.xpose.msra.mxu0 %v211
    %278 = vmatpush.xpose.msra.mxu0 %v209
    %279 = vmatpush.xpose.msra.mxu0 %v207
    %280 = vmatpush.xpose.msra.mxu0 %v205
    %281 = vmatpush.xpose.msra.mxu0 %v203
    %282 = vmatpush.xpose.msra.mxu0 %v201
    %283 = vmatpush.xpose.msra.mxu0 %v199
    %284 = vmatpush.xpose.msra.mxu0 %v197
    %285 = vmatpush.xpose.msra.mxu0 %v195
    %286 = vmatpush.xpose.msra.mxu0 %v193
    %287 = vmatmul.f32.gmra.mxu0 %v159
    %v288 = vpop.f32.mrf.mxu0
    %v289 = vadd.f32 %v228, %v288
    %290 = vdwg.mxu0
    %291 = vmatpush.xpose.msra.mxu0 %v224
    %292 = vmatpush.xpose.msra.mxu0 %v222
    %293 = vmatpush.xpose.msra.mxu0 %v220
    %294 = vmatpush.xpose.msra.mxu0 %v218
    %295 = vmatpush.xpose.msra.mxu0 %v216
    %296 = vmatpush.xpose.msra.mxu0 %v214
    %297 = vmatpush.xpose.msra.mxu0 %v212
    %298 = vmatpush.xpose.msra.mxu0 %v210
    %299 = vmatpush.xpose.msra.mxu0 %v208
    %300 = vmatpush.xpose.msra.mxu0 %v206
    %301 = vmatpush.xpose.msra.mxu0 %v204
    %302 = vmatpush.xpose.msra.mxu0 %v202
    %303 = vmatpush.xpose.msra.mxu0 %v200
    %304 = vmatpush.xpose.msra.mxu0 %v198
    %305 = vmatpush.xpose.msra.mxu0 %v196
    %306 = vmatpush.xpose.msra.mxu0 %v194
    %307 = vmatmul.f32.gmra.mxu0 %v160
    %v308 = vpop.f32.mrf.mxu0
    %v309 = vadd.f32 %v289, %v308
    %310 = vdwg.mxu0
    %v311 = vmax.f32 %v269, 0.0
    %v312 = vmax.f32 %v309, 0.0
    %313 = vst [vmem:[#allocation10] sm:$0xff] %v311
    %314 = vst [vmem:[#allocation10 + $0x8] sm:$0xff] %v312
    // Predicated region
    $region38: #{tpu_custom_call.1} parent=1 // pred_check
      _
    $region39: #{tpu_custom_call.1} parent=1 // pred_check_branch
      %316 = sbr.rel (0) target = $region41
    $region40: #{tpu_custom_call.1} parent=1 // pred_region
      %318 = vsyncadd [#allocation4], 0
      %s320 = sshll.u32 [#allocation10], 4
      %s321 = int_to_ptr.vmem [resolvable:$true] %s320
      %s322 = sshll.u32 %s5, 4
      %s323 = int_to_ptr.hbm [resolvable:$true] %s322
      %325 = dma.vmem_to_hbm [thread:$0]  %s321, 256, %s323, [#allocation4]
    $region41: #{tpu_custom_call.1} parent=1 // pred_fallthru
      _
    // Predicated region
    $region42: #{tpu_custom_call.1} parent=1 // pred_check
      _
    $region43: #{tpu_custom_call.1} parent=1 // pred_check_branch
      %327 = sbr.rel (0) target = $region45
    $region44: #{tpu_custom_call.1} parent=1 // pred_region
      %329 = dma.done [#allocation4], 256
    $region45: #{tpu_custom_call.1} parent=1 // pred_fallthru
      _
    %330 = vsyncpa [#allocation3], 1
    %331 = vsyncpa [#allocation6], 1
    %332 = vsyncpa [#allocation9], 1
    %333 = vsyncpa [#allocation4], 1

</llo_original>
